<compile_context>
chip_gen: v7x
topology: tpu7x:2x2x1
jax: 0.10.0
libtpu: 0.0.40
codegen_flags: <defaults>
</compile_context>

<pallas_src>
import jax
import jax.numpy as jnp
from jax.experimental import pallas as pl
from jax.experimental.pallas import tpu as pltpu

# ---- constants implied by the module (Dims / Tokens / Embeddings) -------------
EMBEDDING_SIZE = 8           # 35 tokens * 8 = 280 = mlp input size
RESULT_STATE = 243           # Dims.RESULT_STATE (3^5 colour-result states)
RESULT_STATE_PAD = 256       # lane-dense padded logits width
TOKENS_EXACT = 3             # result vocab = EXACT + 1 = 4 (0 is padding)
EMB_RESULT = 0               # Embeddings.RESULT channel
EMB_LETTER = 1               # Embeddings.LETTER channel
HID = 256
IN_FEATS = 280               # (30 state tokens + 5 action letters) * EMBEDDING_SIZE
WORD_VOCAB = 50              # synthetic word dictionary size
TB_MAX = 1024                # batch tile; ~10 MiB total VMEM footprint at 1024


def _round_up(x, m):
    return ((x + m - 1) // m) * m


def _elu(v):
    # torch.nn.ELU(alpha=1.0); clamp the exp argument so the discarded branch
    # never produces inf.
    return jnp.where(v > 0, v, jnp.exp(jnp.minimum(v, 0.0)) - 1.0)


def _mlp_softmax_kernel(x_ref, w1_ref, b1_ref, w2_ref, b2_ref, w3_ref, b3_ref,
                        w4_ref, b4_ref, logp_ref, probs_ref):
    """output_layer MLP + F.log_softmax + Categorical(logits).probs for one batch tile.

    bf16 matmul operands with f32 MXU accumulation; all elementwise math in f32.
    Logits are lane-padded to 256; pad columns are masked before the softmax.
    """
    x = x_ref[...]                                                        # (TB, 280) bf16
    h = jnp.dot(x, w1_ref[...], preferred_element_type=jnp.float32) + b1_ref[...]
    h = _elu(h)
    h = jnp.dot(h.astype(jnp.bfloat16), w2_ref[...],
                preferred_element_type=jnp.float32) + b2_ref[...]
    h = _elu(h)
    h = jnp.dot(h.astype(jnp.bfloat16), w3_ref[...],
                preferred_element_type=jnp.float32) + b3_ref[...]
    h = _elu(h)
    logits = jnp.dot(h.astype(jnp.bfloat16), w4_ref[...],
                     preferred_element_type=jnp.float32) + b4_ref[...]    # (TB, 256)

    # Mask the 13 pad columns so they contribute nothing to the softmax
    # (probs pad lanes become exactly 0, logp pad lanes ~ -1e30).
    col = jax.lax.broadcasted_iota(jnp.int32, logits.shape, 1)
    logits = jnp.where(col < RESULT_STATE, logits, jnp.float32(-1e30))

    m = jnp.max(logits, axis=-1, keepdims=True)
    z = logits - m
    e = jnp.exp(z)
    s = jnp.sum(e, axis=-1, keepdims=True)
    # Exact reciprocal on the (TB, 1) denominator: the approximate EUP reciprocal
    # (pl.reciprocal(approx=True)) had ~4e-3 relative error and broke sum(probs)=1.
    inv_s = 1.0 / s
    logp_ref[...] = (z - jnp.log(s)).astype(logp_ref.dtype)     # F.log_softmax(x, dim=1)
    probs_ref[...] = (e * inv_s).astype(probs_ref.dtype)        # Categorical(logits=x).probs


def mlp_forward(x, params, out_dtype=jnp.bfloat16):
    """x: (B, 280).  Returns lane-padded (log_probs, probs), each (B, 256) out_dtype."""
    B = x.shape[0]
    # Largest comfortable tile; keep grid >= 2 at large batch so v7x can shard the
    # batch axis across its two TensorCores via dimension_semantics=("parallel",).
    TB = min(TB_MAX, _round_up(pl.cdiv(B, 2), 8))
    grid = (pl.cdiv(B, TB),)   # no batch padding: ragged edge block writes are masked

    xb = x.astype(jnp.bfloat16)
    w1 = params["w1"].astype(jnp.bfloat16)
    w2 = params["w2"].astype(jnp.bfloat16)
    w3 = params["w3"].astype(jnp.bfloat16)
    w4 = jnp.pad(params["w4"],
                 ((0, 0), (0, RESULT_STATE_PAD - RESULT_STATE))).astype(jnp.bfloat16)
    b4 = jnp.pad(params["b4"], ((0, 0), (0, RESULT_STATE_PAD - RESULT_STATE)))

    def row_spec(shape):
        return pl.BlockSpec(shape, lambda i: (i, 0))

    def const_spec(shape):
        # Constant index_map -> weights stay VMEM-resident across grid steps.
        # (Optional v7x-only tweak: pipeline_mode=pl.Buffered(1) to drop the
        #  pointless second buffer; skipped here for maximum portability.)
        return pl.BlockSpec(shape, lambda i: (0, 0))

    out_shape = (jax.ShapeDtypeStruct((B, RESULT_STATE_PAD), out_dtype),
                 jax.ShapeDtypeStruct((B, RESULT_STATE_PAD), out_dtype))

    logp, probs = pl.pallas_call(
        _mlp_softmax_kernel,
        out_shape=out_shape,
        grid_spec=pltpu.PrefetchScalarGridSpec(
            num_scalar_prefetch=0,
            grid=grid,
            in_specs=[
                row_spec((TB, IN_FEATS)),               # x (batch-tiled, double-buffered)
                const_spec((IN_FEATS, HID)),            # w1 (resident across grid steps)
                const_spec((1, HID)),                   # b1
                const_spec((HID, HID)),                 # w2
                const_spec((1, HID)),                   # b2
                const_spec((HID, HID)),                 # w3
                const_spec((1, HID)),                   # b3
                const_spec((HID, RESULT_STATE_PAD)),    # w4 (lane-padded)
                const_spec((1, RESULT_STATE_PAD)),      # b4 (lane-padded)
            ],
            out_specs=(
                row_spec((TB, RESULT_STATE_PAD)),
                row_spec((TB, RESULT_STATE_PAD)),
            )),
        compiler_params=pltpu.CompilerParams(
            dimension_semantics=("parallel",),          # megacore sharding on v7x
            vmem_limit_bytes=32 * 1024 * 1024),         # lift v5e's 16 MiB scoped default
    )(xb, w1, params["b1"], w2, params["b2"], w3, params["b3"], w4, b4)

    return logp, probs


def _embed_front_end(state, action, params, word_letters, dtype=jnp.bfloat16):
    """Embedding gathers + concat producing the (B, 280) MLP input slab in `dtype`."""
    # TODO(synk): full fusion (pass the 35 int32 ids + tiny tables into the kernel
    # and build x in-VMEM) would remove this (B, 280) HBM round-trip entirely;
    # emitting the slab directly in bf16 already halves that stream.
    B = state.shape[0]
    action_letters = word_letters[action[:, 0]]                        # (B, 5)
    r_emb = params["result_emb"].astype(dtype)
    l_emb = params["letter_emb"].astype(dtype)
    c_emb = params["col_emb"].astype(dtype)
    state_result = r_emb[state[..., EMB_RESULT]]                       # (B, 6, 5, E)
    state_letters = l_emb[state[..., EMB_LETTER]]                      # (B, 6, 5, E)
    combined = (state_result + state_letters + c_emb[None, None, :, :]
                ).reshape(B, 30, EMBEDDING_SIZE)                       # 'b t h s -> b (t h) s'
    emb_actions = l_emb[action_letters]                                # (B, 5, E)
    x = jnp.concatenate([combined, emb_actions], axis=1).reshape(B, -1)
    return x                                                           # (B, 280) dtype


def state_action_transition_forward(state, action, params, word_letters,
                                    out_dtype=jnp.bfloat16):
    """JAX equivalent of StateActionTransition.forward."""
    assert state.ndim == 4, f"expect dim of 4 got {state.shape}"
    assert action.ndim == 2, f"expect dim of 2 got {action.shape}"

    x = _embed_front_end(state, action, params, word_letters, dtype=jnp.bfloat16)
    logp_pad, probs_pad = mlp_forward(x, params, out_dtype=out_dtype)
    # Module contract is 243-wide outputs; consumers that can accept the 256-wide
    # lane-padded slabs (pad lanes: probs == 0, logp == -1e30) can skip this copy.
    log_probs = logp_pad[:, :RESULT_STATE]
    probs = probs_pad[:, :RESULT_STATE]

    turns = jnp.count_nonzero(state, axis=1)[:, 0, 0].reshape(-1, 1)
    bools = jnp.where(turns >= 5, 1, 0)
    # TODO(synk): reward_over_states() is not defined in the reference source;
    # returning the >=5-turns boolean as the reward placeholder.
    rewards = bools
    return log_probs, probs, rewards


def _mlp_reference(x, params):
    """Pure-JAX f32 reference of the output_layer + log_softmax / probs."""
    h = _elu(x @ params["w1"] + params["b1"])
    h = _elu(h @ params["w2"] + params["b2"])
    h = _elu(h @ params["w3"] + params["b3"])
    logits = h @ params["w4"] + params["b4"]
    return jax.nn.log_softmax(logits, axis=-1), jax.nn.softmax(logits, axis=-1)


def init_params(key):
    ks = jax.random.split(key, 12)

    def lin(kw, fan_in, fan_out):
        bound = 1.0 / jnp.sqrt(fan_in)
        return jax.random.uniform(kw, (fan_in, fan_out), jnp.float32, -bound, bound)

    result_emb = jax.random.normal(ks[0], (TOKENS_EXACT + 1, EMBEDDING_SIZE), jnp.float32)
    result_emb = result_emb.at[0].set(0.0)   # padding_idx=0
    letter_emb = jax.random.normal(ks[1], (28, EMBEDDING_SIZE), jnp.float32)
    letter_emb = letter_emb.at[0].set(0.0)   # padding_idx=0
    col_emb = jax.random.normal(ks[2], (5, EMBEDDING_SIZE), jnp.float32)
    row_emb = jax.random.normal(ks[3], (6, EMBEDDING_SIZE), jnp.float32)  # unused in forward

    return dict(
        result_emb=result_emb, letter_emb=letter_emb, col_emb=col_emb, row_emb=row_emb,
        w1=lin(ks[4], IN_FEATS, HID),
        b1=jax.random.uniform(ks[5], (1, HID), jnp.float32, -0.05, 0.05),
        w2=lin(ks[6], HID, HID),
        b2=jax.random.uniform(ks[7], (1, HID), jnp.float32, -0.05, 0.05),
        w3=lin(ks[8], HID, HID),
        b3=jax.random.uniform(ks[9], (1, HID), jnp.float32, -0.05, 0.05),
        w4=lin(ks[10], HID, RESULT_STATE),
        b4=jax.random.uniform(ks[11], (1, RESULT_STATE), jnp.float32, -0.05, 0.05),
    )


if __name__ == "__main__":
    key = jax.random.PRNGKey(0)
    k_params, k_words, k_state_r, k_state_l, k_action = jax.random.split(key, 5)

    params = init_params(k_params)

    # synthetic word dictionary: each word index -> 5 letter ids in [1, 26]
    word_letters = jax.random.randint(k_words, (WORD_VOCAB, 5), 1, 27, dtype=jnp.int32)

    # small deterministic inputs: B=2, state (B, 6, 5, 2)
    B = 2
    results = jax.random.randint(k_state_r, (B, 6, 5), 1, TOKENS_EXACT + 1, dtype=jnp.int32)
    letters = jax.random.randint(k_state_l, (B, 6, 5), 1, 27, dtype=jnp.int32)
    # emulate partially-played boards: sample 0 has 2 turns filled, sample 1 has 6
    row_idx = jnp.arange(6)[None, :, None]                          # (1, 6, 1)
    filled = jnp.array([2, 6], dtype=jnp.int32)[:, None, None]      # (B, 1, 1)
    mask = (row_idx < filled).astype(jnp.int32)                     # (B, 6, 1)
    results = results * mask
    letters = letters * mask
    state = jnp.stack([results, letters], axis=-1)                  # (B, 6, 5, 2)

    action = jax.random.randint(k_action, (B, 1), 0, WORD_VOCAB, dtype=jnp.int32)

    fwd = jax.jit(state_action_transition_forward)
    log_probs, probs, rewards = fwd(state, action, params, word_letters)
    jax.block_until_ready((log_probs, probs, rewards))

    # shape checks
    assert log_probs.shape == (B, RESULT_STATE)
    assert probs.shape == (B, RESULT_STATE)

    # internal-consistency checks (f32 accumulation for the sum; outputs are bf16)
    lp32 = log_probs.astype(jnp.float32)
    p32 = probs.astype(jnp.float32)
    assert bool(jnp.allclose(jnp.sum(p32, axis=-1), 1.0, atol=2e-3))
    assert bool(jnp.allclose(jnp.exp(lp32), p32, atol=5e-3))

    # cross-check against the pure-JAX f32 reference (bf16 matmuls / bf16 outputs
    # => loose tolerances)
    x_ref = _embed_front_end(state, action, params, word_letters, dtype=jnp.float32)
    ref_logp, ref_probs = _mlp_reference(x_ref, params)
    assert bool(jnp.allclose(p32, ref_probs, atol=2e-2))
    assert bool(jnp.allclose(lp32, ref_logp, atol=5e-1))

    print("KERNEL_OK")
</pallas_src>

<mosaic_0001>
module attributes {stable_mosaic.version = 11 : i64} {
  func.func @_mlp_softmax_kernel(%arg0: i32, %arg1: memref<8x280xbf16, #tpu.memory_space<vmem>>, %arg2: memref<280x256xbf16, #tpu.memory_space<vmem>>, %arg3: memref<1x256xf32, #tpu.memory_space<vmem>>, %arg4: memref<256x256xbf16, #tpu.memory_space<vmem>>, %arg5: memref<1x256xf32, #tpu.memory_space<vmem>>, %arg6: memref<256x256xbf16, #tpu.memory_space<vmem>>, %arg7: memref<1x256xf32, #tpu.memory_space<vmem>>, %arg8: memref<256x256xbf16, #tpu.memory_space<vmem>>, %arg9: memref<1x256xf32, #tpu.memory_space<vmem>>, %arg10: memref<8x256xbf16, #tpu.memory_space<vmem>>, %arg11: memref<8x256xbf16, #tpu.memory_space<vmem>>) attributes {dimension_semantics = [#tpu.dimension_semantics<parallel>], iteration_bounds = array<i64: 1>, scalar_prefetch = 0 : i64, scratch_operands = 0 : i64, tpu.core_type = #tpu.core_type<tc>, window_params = [{transform_indices = @transform_0, window_bounds = array<i64: 8, 280>}, {pipeline_mode = #tpu.pipeline_mode<synchronous>, transform_indices = @transform_1, window_bounds = array<i64: 280, 256>}, {pipeline_mode = #tpu.pipeline_mode<synchronous>, transform_indices = @transform_2, window_bounds = array<i64: 1, 256>}, {pipeline_mode = #tpu.pipeline_mode<synchronous>, transform_indices = @transform_3, window_bounds = array<i64: 256, 256>}, {pipeline_mode = #tpu.pipeline_mode<synchronous>, transform_indices = @transform_4, window_bounds = array<i64: 1, 256>}, {pipeline_mode = #tpu.pipeline_mode<synchronous>, transform_indices = @transform_5, window_bounds = array<i64: 256, 256>}, {pipeline_mode = #tpu.pipeline_mode<synchronous>, transform_indices = @transform_6, window_bounds = array<i64: 1, 256>}, {pipeline_mode = #tpu.pipeline_mode<synchronous>, transform_indices = @transform_7, window_bounds = array<i64: 256, 256>}, {pipeline_mode = #tpu.pipeline_mode<synchronous>, transform_indices = @transform_8, window_bounds = array<i64: 1, 256>}, {transform_indices = @transform_9, window_bounds = array<i64: 8, 256>}, {transform_indices = @transform_10, window_bounds = array<i64: 8, 256>}]} {
    %c0 = arith.constant 0 : index
    %c0_0 = arith.constant 0 : index
    %0 = vector.load %arg1[%c0, %c0_0] : memref<8x280xbf16, #tpu.memory_space<vmem>>, vector<8x280xbf16>
    %c0_1 = arith.constant 0 : index
    %c0_2 = arith.constant 0 : index
    %1 = vector.load %arg2[%c0_1, %c0_2] : memref<280x256xbf16, #tpu.memory_space<vmem>>, vector<280x256xbf16>
    %cst = arith.constant dense<0.000000e+00> : vector<8x256xf32>
    %2 = tpu.matmul %0, %1, %cst {dimension_numbers = #tpu.dot_dimension_numbers<[1], [0], [0], [1], [0, 0, 1, 1], [], []>} : vector<8x280xbf16>, vector<280x256xbf16>, vector<8x256xf32> -> vector<8x256xf32>
    %c0_3 = arith.constant 0 : index
    %c0_4 = arith.constant 0 : index
    %3 = vector.load %arg3[%c0_3, %c0_4] : memref<1x256xf32, #tpu.memory_space<vmem>>, vector<1x256xf32>
    %4 = vector.broadcast %3 : vector<1x256xf32> to vector<8x256xf32>
    %5 = arith.addf %2, %4 : vector<8x256xf32>
    %cst_5 = arith.constant 0.000000e+00 : f32
    %6 = vector.broadcast %cst_5 : f32 to vector<8x256xf32>
    %7 = arith.cmpf ogt, %5, %6 : vector<8x256xf32>
    %cst_6 = arith.constant 0.000000e+00 : f32
    %8 = vector.broadcast %cst_6 : f32 to vector<8x256xf32>
    %9 = arith.minimumf %5, %8 : vector<8x256xf32>
    %10 = math.exp %9 : vector<8x256xf32>
    %cst_7 = arith.constant 1.000000e+00 : f32
    %11 = vector.broadcast %cst_7 : f32 to vector<8x256xf32>
    %12 = arith.subf %10, %11 : vector<8x256xf32>
    %13 = arith.select %7, %5, %12 : vector<8x256xi1>, vector<8x256xf32>
    %14 = arith.truncf %13 : vector<8x256xf32> to vector<8x256xbf16>
    %c0_8 = arith.constant 0 : index
    %c0_9 = arith.constant 0 : index
    %15 = vector.load %arg4[%c0_8, %c0_9] : memref<256x256xbf16, #tpu.memory_space<vmem>>, vector<256x256xbf16>
    %cst_10 = arith.constant dense<0.000000e+00> : vector<8x256xf32>
    %16 = tpu.matmul %14, %15, %cst_10 {dimension_numbers = #tpu.dot_dimension_numbers<[1], [0], [0], [1], [0, 0, 1, 1], [], []>} : vector<8x256xbf16>, vector<256x256xbf16>, vector<8x256xf32> -> vector<8x256xf32>
    %c0_11 = arith.constant 0 : index
    %c0_12 = arith.constant 0 : index
    %17 = vector.load %arg5[%c0_11, %c0_12] : memref<1x256xf32, #tpu.memory_space<vmem>>, vector<1x256xf32>
    %18 = vector.broadcast %17 : vector<1x256xf32> to vector<8x256xf32>
    %19 = arith.addf %16, %18 : vector<8x256xf32>
    %cst_13 = arith.constant 0.000000e+00 : f32
    %20 = vector.broadcast %cst_13 : f32 to vector<8x256xf32>
    %21 = arith.cmpf ogt, %19, %20 : vector<8x256xf32>
    %cst_14 = arith.constant 0.000000e+00 : f32
    %22 = vector.broadcast %cst_14 : f32 to vector<8x256xf32>
    %23 = arith.minimumf %19, %22 : vector<8x256xf32>
    %24 = math.exp %23 : vector<8x256xf32>
    %cst_15 = arith.constant 1.000000e+00 : f32
    %25 = vector.broadcast %cst_15 : f32 to vector<8x256xf32>
    %26 = arith.subf %24, %25 : vector<8x256xf32>
    %27 = arith.select %21, %19, %26 : vector<8x256xi1>, vector<8x256xf32>
    %28 = arith.truncf %27 : vector<8x256xf32> to vector<8x256xbf16>
    %c0_16 = arith.constant 0 : index
    %c0_17 = arith.constant 0 : index
    %29 = vector.load %arg6[%c0_16, %c0_17] : memref<256x256xbf16, #tpu.memory_space<vmem>>, vector<256x256xbf16>
    %cst_18 = arith.constant dense<0.000000e+00> : vector<8x256xf32>
    %30 = tpu.matmul %28, %29, %cst_18 {dimension_numbers = #tpu.dot_dimension_numbers<[1], [0], [0], [1], [0, 0, 1, 1], [], []>} : vector<8x256xbf16>, vector<256x256xbf16>, vector<8x256xf32> -> vector<8x256xf32>
    %c0_19 = arith.constant 0 : index
    %c0_20 = arith.constant 0 : index
    %31 = vector.load %arg7[%c0_19, %c0_20] : memref<1x256xf32, #tpu.memory_space<vmem>>, vector<1x256xf32>
    %32 = vector.broadcast %31 : vector<1x256xf32> to vector<8x256xf32>
    %33 = arith.addf %30, %32 : vector<8x256xf32>
    %cst_21 = arith.constant 0.000000e+00 : f32
    %34 = vector.broadcast %cst_21 : f32 to vector<8x256xf32>
    %35 = arith.cmpf ogt, %33, %34 : vector<8x256xf32>
    %cst_22 = arith.constant 0.000000e+00 : f32
    %36 = vector.broadcast %cst_22 : f32 to vector<8x256xf32>
    %37 = arith.minimumf %33, %36 : vector<8x256xf32>
    %38 = math.exp %37 : vector<8x256xf32>
    %cst_23 = arith.constant 1.000000e+00 : f32
    %39 = vector.broadcast %cst_23 : f32 to vector<8x256xf32>
    %40 = arith.subf %38, %39 : vector<8x256xf32>
    %41 = arith.select %35, %33, %40 : vector<8x256xi1>, vector<8x256xf32>
    %42 = arith.truncf %41 : vector<8x256xf32> to vector<8x256xbf16>
    %c0_24 = arith.constant 0 : index
    %c0_25 = arith.constant 0 : index
    %43 = vector.load %arg8[%c0_24, %c0_25] : memref<256x256xbf16, #tpu.memory_space<vmem>>, vector<256x256xbf16>
    %cst_26 = arith.constant dense<0.000000e+00> : vector<8x256xf32>
    %44 = tpu.matmul %42, %43, %cst_26 {dimension_numbers = #tpu.dot_dimension_numbers<[1], [0], [0], [1], [0, 0, 1, 1], [], []>} : vector<8x256xbf16>, vector<256x256xbf16>, vector<8x256xf32> -> vector<8x256xf32>
    %c0_27 = arith.constant 0 : index
    %c0_28 = arith.constant 0 : index
    %45 = vector.load %arg9[%c0_27, %c0_28] : memref<1x256xf32, #tpu.memory_space<vmem>>, vector<1x256xf32>
    %46 = vector.broadcast %45 : vector<1x256xf32> to vector<8x256xf32>
    %47 = arith.addf %44, %46 : vector<8x256xf32>
    %48 = tpu.iota {dimensions = array<i32: 1>} : vector<8x256xi32>
    %c243_i32 = arith.constant 243 : i32
    %49 = vector.broadcast %c243_i32 : i32 to vector<8x256xi32>
    %50 = arith.cmpi slt, %48, %49 : vector<8x256xi32>
    %cst_29 = arith.constant -1.000000e+30 : f32
    %51 = vector.broadcast %cst_29 : f32 to vector<8x256xf32>
    %52 = arith.select %50, %47, %51 : vector<8x256xi1>, vector<8x256xf32>
    %cst_30 = arith.constant dense<0xFF800000> : vector<8xf32>
    %53 = vector.multi_reduction <maximumf>, %52, %cst_30 [1] : vector<8x256xf32> to vector<8xf32>
    %54 = vector.shape_cast %53 : vector<8xf32> to vector<8x1xf32>
    %55 = vector.broadcast %54 : vector<8x1xf32> to vector<8x256xf32>
    %56 = arith.subf %52, %55 : vector<8x256xf32>
    %57 = math.exp %56 : vector<8x256xf32>
    %cst_31 = arith.constant dense<0.000000e+00> : vector<8xf32>
    %58 = vector.multi_reduction <add>, %57, %cst_31 [1] : vector<8x256xf32> to vector<8xf32>
    %59 = vector.shape_cast %58 : vector<8xf32> to vector<8x1xf32>
    %cst_32 = arith.constant 1.000000e+00 : f32
    %60 = vector.broadcast %cst_32 : f32 to vector<8x1xf32>
    %61 = arith.divf %60, %59 : vector<8x1xf32>
    %62 = math.log %59 : vector<8x1xf32>
    %63 = vector.broadcast %62 : vector<8x1xf32> to vector<8x256xf32>
    %64 = arith.subf %56, %63 : vector<8x256xf32>
    %65 = arith.truncf %64 : vector<8x256xf32> to vector<8x256xbf16>
    %c0_33 = arith.constant 0 : index
    %c0_34 = arith.constant 0 : index
    %66 = vector.load %arg10[%c0_33, %c0_34] : memref<8x256xbf16, #tpu.memory_space<vmem>>, vector<8x256xbf16>
    tpu.vector_store %arg10[%c0_33, %c0_34], %65 {strides = array<i32>} : memref<8x256xbf16, #tpu.memory_space<vmem>>, vector<8x256xbf16>,
    %67 = vector.broadcast %61 : vector<8x1xf32> to vector<8x256xf32>
    %68 = arith.mulf %57, %67 : vector<8x256xf32>
    %69 = arith.truncf %68 : vector<8x256xf32> to vector<8x256xbf16>
    %c0_35 = arith.constant 0 : index
    %c0_36 = arith.constant 0 : index
    %70 = vector.load %arg11[%c0_35, %c0_36] : memref<8x256xbf16, #tpu.memory_space<vmem>>, vector<8x256xbf16>
    tpu.vector_store %arg11[%c0_35, %c0_36], %69 {strides = array<i32>} : memref<8x256xbf16, #tpu.memory_space<vmem>>, vector<8x256xbf16>,
    return
  }
  func.func @transform_0(%arg0: i32) -> (i32, i32) {
    %c0_i32 = arith.constant 0 : i32
    %c0_i32_0 = arith.constant 0 : i32
    return %arg0, %c0_i32 : i32, i32
  }
  func.func @transform_1(%arg0: i32) -> (i32, i32) {
    %c0_i32 = arith.constant 0 : i32
    %c0_i32_0 = arith.constant 0 : i32
    %c0_i32_1 = arith.constant 0 : i32
    return %c0_i32, %c0_i32_0 : i32, i32
  }
  func.func @transform_2(%arg0: i32) -> (i32, i32) {
    %c0_i32 = arith.constant 0 : i32
    %c0_i32_0 = arith.constant 0 : i32
    %c0_i32_1 = arith.constant 0 : i32
    return %c0_i32, %c0_i32_0 : i32, i32
  }
  func.func @transform_3(%arg0: i32) -> (i32, i32) {
    %c0_i32 = arith.constant 0 : i32
    %c0_i32_0 = arith.constant 0 : i32
    %c0_i32_1 = arith.constant 0 : i32
    return %c0_i32, %c0_i32_0 : i32, i32
  }
  func.func @transform_4(%arg0: i32) -> (i32, i32) {
    %c0_i32 = arith.constant 0 : i32
    %c0_i32_0 = arith.constant 0 : i32
    %c0_i32_1 = arith.constant 0 : i32
    return %c0_i32, %c0_i32_0 : i32, i32
  }
  func.func @transform_5(%arg0: i32) -> (i32, i32) {
    %c0_i32 = arith.constant 0 : i32
    %c0_i32_0 = arith.constant 0 : i32
    %c0_i32_1 = arith.constant 0 : i32
    return %c0_i32, %c0_i32_0 : i32, i32
  }
  func.func @transform_6(%arg0: i32) -> (i32, i32) {
    %c0_i32 = arith.constant 0 : i32
    %c0_i32_0 = arith.constant 0 : i32
    %c0_i32_1 = arith.constant 0 : i32
    return %c0_i32, %c0_i32_0 : i32, i32
  }
  func.func @transform_7(%arg0: i32) -> (i32, i32) {
    %c0_i32 = arith.constant 0 : i32
    %c0_i32_0 = arith.constant 0 : i32
    %c0_i32_1 = arith.constant 0 : i32
    return %c0_i32, %c0_i32_0 : i32, i32
  }
  func.func @transform_8(%arg0: i32) -> (i32, i32) {
    %c0_i32 = arith.constant 0 : i32
    %c0_i32_0 = arith.constant 0 : i32
    %c0_i32_1 = arith.constant 0 : i32
    return %c0_i32, %c0_i32_0 : i32, i32
  }
  func.func @transform_9(%arg0: i32) -> (i32, i32) {
    %c0_i32 = arith.constant 0 : i32
    %c0_i32_0 = arith.constant 0 : i32
    return %arg0, %c0_i32 : i32, i32
  }
  func.func @transform_10(%arg0: i32) -> (i32, i32) {
    %c0_i32 = arith.constant 0 : i32
    %c0_i32_0 = arith.constant 0 : i32
    return %arg0, %c0_i32 : i32, i32
  }
}

</mosaic_0001>

<llo_original>
// kernel: state_action_transition_forward.1
$region0: #{state_action_transition_forward.1}
  #allocation0 [shape = 'u32[]', space=smem, size = 0x4, offset = 0x4, fixed_abs, tag = 'smem constant byte address 0x4 - core index']
  #allocation1 [shape = 'u32[144,128]{1,0:T(1,128)}', space=vmem, size = 0x12000, scoped, tag = 'internal scratch']
  %s0 = inlined_call_operand.vmem [shape: bf16[2,280], index: 0, kind: input, shape index: {}]
  %s1 = inlined_call_operand.vmem [shape: bf16[280,256], index: 1, kind: input, shape index: {}]
  %s2 = inlined_call_operand.vmem [shape: f32[1,256], index: 2, kind: input, shape index: {}]
  %s3 = inlined_call_operand.vmem [shape: bf16[256,256], index: 3, kind: input, shape index: {}]
  %s4 = inlined_call_operand.vmem [shape: f32[1,256], index: 4, kind: input, shape index: {}]
  %s5 = inlined_call_operand.vmem [shape: bf16[256,256], index: 5, kind: input, shape index: {}]
  %s6 = inlined_call_operand.vmem [shape: f32[1,256], index: 6, kind: input, shape index: {}]
  %s7 = inlined_call_operand.vmem [shape: bf16[256,256], index: 7, kind: input, shape index: {}]
  %s8 = inlined_call_operand.vmem [shape: f32[1,256], index: 8, kind: input, shape index: {}]
  %s9 = inlined_call_operand.hbm [shape: bf16[2,256], index: 9, kind: output, shape index: {0}]
  %s10 = inlined_call_operand.hbm [shape: bf16[2,256], index: 10, kind: output, shape index: {1}]
  %11 = xla_tuple %s9, %s10
  %s12 = sld [smem:[#allocation0]]
  $region54: #{state_action_transition_forward.1} parent=0
    _
  %s14 = ssub.s32 1, %s12
  %s15 = scalar_select 0, %s14, %s12
  $region1: #{state_action_transition_forward.1} parent=0
    #allocation2 [shape = 'u8[4096]{0}', space=vmem, size = 0x1000, scoped, tag = 'output window, operand 0, single buffered']
    #allocation3 [shape = 's32[1]{0}', space=sflag, size = 0x4, scoped, tag = 'scoped memory for state_action_transition_forward.1']
    #allocation4 [shape = 'u8[4096]{0}', space=vmem, size = 0x1000, scoped, tag = 'output window, operand 1, single buffered']
    #allocation5 [shape = 's32[1]{0}', space=sflag, size = 0x4, scoped, tag = 'scoped memory for state_action_transition_forward.1']
    %16 = vsyncpa [#allocation3], 0
    %17 = vsyncpa [#allocation5], 0
    // Predicated region
    $region2: #{state_action_transition_forward.1} parent=1 // pred_check
      _
    $region3: #{state_action_transition_forward.1} parent=1 // pred_check_branch
      %19 = sbr.rel (0) target = $region5
    $region4: #{state_action_transition_forward.1} parent=1 // pred_region
      _
    $region5: #{state_action_transition_forward.1} parent=1 // pred_fallthru
      _
    // Predicated region
    $region6: #{state_action_transition_forward.1} parent=1 // pred_check
      _
    $region7: #{state_action_transition_forward.1} parent=1 // pred_check_branch
      %21 = sbr.rel (0) target = $region9
    $region8: #{state_action_transition_forward.1} parent=1 // pred_region
      _
    $region9: #{state_action_transition_forward.1} parent=1 // pred_fallthru
      _
    // Predicated region
    $region10: #{state_action_transition_forward.1} parent=1 // pred_check
      _
    $region11: #{state_action_transition_forward.1} parent=1 // pred_check_branch
      %23 = sbr.rel (0) target = $region13
    $region12: #{state_action_transition_forward.1} parent=1 // pred_region
      _
    $region13: #{state_action_transition_forward.1} parent=1 // pred_fallthru
      _
    // Predicated region
    $region14: #{state_action_transition_forward.1} parent=1 // pred_check
      _
    $region15: #{state_action_transition_forward.1} parent=1 // pred_check_branch
      %25 = sbr.rel (0) target = $region17
    $region16: #{state_action_transition_forward.1} parent=1 // pred_region
      _
    $region17: #{state_action_transition_forward.1} parent=1 // pred_fallthru
      _
    // Predicated region
    $region18: #{state_action_transition_forward.1} parent=1 // pred_check
      _
    $region19: #{state_action_transition_forward.1} parent=1 // pred_check_branch
      %27 = sbr.rel (0) target = $region21
    $region20: #{state_action_transition_forward.1} parent=1 // pred_region
      _
    $region21: #{state_action_transition_forward.1} parent=1 // pred_fallthru
      _
    // Predicated region
    $region22: #{state_action_transition_forward.1} parent=1 // pred_check
      _
    $region23: #{state_action_transition_forward.1} parent=1 // pred_check_branch
      %29 = sbr.rel (0) target = $region25
    $region24: #{state_action_transition_forward.1} parent=1 // pred_region
      _
    $region25: #{state_action_transition_forward.1} parent=1 // pred_fallthru
      _
    // Predicated region
    $region26: #{state_action_transition_forward.1} parent=1 // pred_check
      _
    $region27: #{state_action_transition_forward.1} parent=1 // pred_check_branch
      %31 = sbr.rel (0) target = $region29
    $region28: #{state_action_transition_forward.1} parent=1 // pred_region
      _
    $region29: #{state_action_transition_forward.1} parent=1 // pred_fallthru
      _
    // Predicated region
    $region30: #{state_action_transition_forward.1} parent=1 // pred_check
      _
    $region31: #{state_action_transition_forward.1} parent=1 // pred_check_branch
      %33 = sbr.rel (0) target = $region33
    $region32: #{state_action_transition_forward.1} parent=1 // pred_region
      _
    $region33: #{state_action_transition_forward.1} parent=1 // pred_fallthru
      _
    // Predicated region
    $region34: #{state_action_transition_forward.1} parent=1 // pred_check
      _
    $region35: #{state_action_transition_forward.1} parent=1 // pred_check_branch
      %35 = sbr.rel (0) target = $region37
    $region36: #{state_action_transition_forward.1} parent=1 // pred_region
      _
    $region37: #{state_action_transition_forward.1} parent=1 // pred_fallthru
      _
    %v37 = vld [vmem:[%s0] sm:$0x7]
    %v38 = vld [vmem:[%s0 + $0x3] sm:$0x7]
    %v39 = vld [vmem:[%s0 + $0x6] sm:$0x7]
    %v40 = vld [vmem:[%s0 + $0x9] sm:$0x7]
    %v41 = vld [vmem:[%s1] sm:$0xff]
    %v42 = vld [vmem:[%s1 + $0x8] sm:$0xff]
    %v43 = vld [vmem:[%s1 + $0x10] sm:$0xff]
    %v44 = vld [vmem:[%s1 + $0x18] sm:$0xff]
    %v45 = vld [vmem:[%s1 + $0x20] sm:$0xff]
    %v46 = vld [vmem:[%s1 + $0x28] sm:$0xff]
    %v47 = vld [vmem:[%s1 + $0x30] sm:$0xff]
    %v48 = vld [vmem:[%s1 + $0x38] sm:$0xff]
    %v49 = vld [vmem:[%s1 + $0x40] sm:$0xff]
    %v50 = vld [vmem:[%s1 + $0x48] sm:$0xff]
    %v51 = vld [vmem:[%s1 + $0x50] sm:$0xff]
    %v52 = vld [vmem:[%s1 + $0x58] sm:$0xff]
    %v53 = vld [vmem:[%s1 + $0x60] sm:$0xff]
    %v54 = vld [vmem:[%s1 + $0x68] sm:$0xff]
    %v55 = vld [vmem:[%s1 + $0x70] sm:$0xff]
    %v56 = vld [vmem:[%s1 + $0x78] sm:$0xff]
    %v57 = vld [vmem:[%s1 + $0x80] sm:$0xff]
    %v58 = vld [vmem:[%s1 + $0x88] sm:$0xff]
    %v59 = vld [vmem:[%s1 + $0x90] sm:$0xff]
    %v60 = vld [vmem:[%s1 + $0x98] sm:$0xff]
    %v61 = vld [vmem:[%s1 + $0xa0] sm:$0xff]
    %v62 = vld [vmem:[%s1 + $0xa8] sm:$0xff]
    %v63 = vld [vmem:[%s1 + $0xb0] sm:$0xff]
    %v64 = vld [vmem:[%s1 + $0xb8] sm:$0xff]
    %v65 = vld [vmem:[%s1 + $0xc0] sm:$0xff]
    %v66 = vld [vmem:[%s1 + $0xc8] sm:$0xff]
    %v67 = vld [vmem:[%s1 + $0xd0] sm:$0xff]
    %v68 = vld [vmem:[%s1 + $0xd8] sm:$0xff]
    %v69 = vld [vmem:[%s1 + $0xe0] sm:$0xff]
    %v70 = vld [vmem:[%s1 + $0xe8] sm:$0xff]
    %v71 = vld [vmem:[%s1 + $0xf0] sm:$0xff]
    %v72 = vld [vmem:[%s1 + $0xf8] sm:$0xff]
    %v73 = vld [vmem:[%s1 + $0x100] sm:$0xff]
    %v74 = vld [vmem:[%s1 + $0x108] sm:$0xff]
    %v75 = vld [vmem:[%s1 + $0x110] sm:$0xff]
    %v76 = vld [vmem:[%s2] sm:$0x3]
    %v78 = vlaneseq
    %v79 = vshrl.u32 %v78, 7
    %v80 = vsub.s32 0, %v79
    %v81 = vrot.slane %v76, %v80
    %v82 = vlaneseq
    %v83 = vshrl.u32 %v82, 7
    %v84 = vsub.s32 1, %v83
    %v85 = vrot.slane %v76, %v84
    %v92 = vcombine.low %v37, %v38
    %v93 = vcombine.low %v39, %v40
    %v95 = vunpack.c.l.s4 1966171168
    %v96 = vunpack.c.0.s8 %v95
    %v97 = vlaneseq
    %v98 = vshrl.u32 %v97, 7
    %v99 = vsub.s32 %v96, %v98
    %v100 = vrot.slane %v92, %v99
    %v102 = vunpack.c.l.s4 1966171168
    %v103 = vunpack.c.0.s8 %v102
    %v104 = vlaneseq
    %v105 = vshrl.u32 %v104, 7
    %v106 = vsub.s32 %v103, %v105
    %v107 = vrot.slane %v93, %v106
    %v108 = vcombine.low %v100, %v107
    %v109 = vcombine.high %v100, %v107
    %v111 = vunpack.c.l.s4 1966171168
    %v112 = vunpack.c.0.s8 %v111
    %v113 = vlaneseq
    %v114 = vshrl.u32 %v113, 7
    %v115 = vsub.s32 %v112, %v114
    %v116 = vrot.slane %v108, %v115
    %v118 = vunpack.c.l.s4 1966171168
    %v119 = vunpack.c.0.s8 %v118
    %v120 = vlaneseq
    %v121 = vshrl.u32 %v120, 7
    %v122 = vsub.s32 %v119, %v121
    %v123 = vrot.slane %v109, %v122
    %v124 = vcombine.high %v116, %v116
    %v162 = vunpack.c.l.b16 %v41
    %v163 = vunpack.c.h.b16 %v41
    %v164 = vunpack.c.l.b16 %v42
    %v165 = vunpack.c.h.b16 %v42
    %v166 = vunpack.c.l.b16 %v43
    %v167 = vunpack.c.h.b16 %v43
    %v168 = vunpack.c.l.b16 %v44
    %v169 = vunpack.c.h.b16 %v44
    %v170 = vunpack.c.l.b16 %v45
    %v171 = vunpack.c.h.b16 %v45
    %v172 = vunpack.c.l.b16 %v46
    %v173 = vunpack.c.h.b16 %v46
    %v174 = vunpack.c.l.b16 %v47
    %v175 = vunpack.c.h.b16 %v47
    %v176 = vunpack.c.l.b16 %v48
    %v177 = vunpack.c.h.b16 %v48
    %v178 = vunpack.c.l.b16 %v49
    %v179 = vunpack.c.h.b16 %v49
    %v180 = vunpack.c.l.b16 %v50
    %v181 = vunpack.c.h.b16 %v50
    %v182 = vunpack.c.l.b16 %v51
    %v183 = vunpack.c.h.b16 %v51
    %v184 = vunpack.c.l.b16 %v52
    %v185 = vunpack.c.h.b16 %v52
    %v186 = vunpack.c.l.b16 %v53
    %v187 = vunpack.c.h.b16 %v53
    %v188 = vunpack.c.l.b16 %v54
    %v189 = vunpack.c.h.b16 %v54
    %v190 = vunpack.c.l.b16 %v55
    %v191 = vunpack.c.h.b16 %v55
    %v192 = vunpack.c.l.b16 %v56
    %v193 = vunpack.c.h.b16 %v56
    %v194 = vunpack.c.l.b16 %v57
    %v195 = vunpack.c.h.b16 %v57
    %v196 = vunpack.c.l.b16 %v58
    %v197 = vunpack.c.h.b16 %v58
    %v198 = vunpack.c.l.b16 %v59
    %v199 = vunpack.c.h.b16 %v59
    %v200 = vunpack.c.l.b16 %v60
    %v201 = vunpack.c.h.b16 %v60
    %v202 = vunpack.c.l.b16 %v61
    %v203 = vunpack.c.h.b16 %v61
    %v204 = vunpack.c.l.b16 %v62
    %v205 = vunpack.c.h.b16 %v62
    %v206 = vunpack.c.l.b16 %v63
    %v207 = vunpack.c.h.b16 %v63
    %v208 = vunpack.c.l.b16 %v64
    %v209 = vunpack.c.h.b16 %v64
    %v210 = vunpack.c.l.b16 %v65
    %v211 = vunpack.c.h.b16 %v65
    %v212 = vunpack.c.l.b16 %v66
    %v213 = vunpack.c.h.b16 %v66
    %v214 = vunpack.c.l.b16 %v67
    %v215 = vunpack.c.h.b16 %v67
    %v216 = vunpack.c.l.b16 %v68
    %v217 = vunpack.c.h.b16 %v68
    %v218 = vunpack.c.l.b16 %v69
    %v219 = vunpack.c.h.b16 %v69
    %v220 = vunpack.c.l.b16 %v70
    %v221 = vunpack.c.h.b16 %v70
    %v222 = vunpack.c.l.b16 %v71
    %v223 = vunpack.c.h.b16 %v71
    %v224 = vunpack.c.l.b16 %v72
    %v225 = vunpack.c.h.b16 %v72
    %v226 = vunpack.c.l.b16 %v73
    %v227 = vunpack.c.h.b16 %v73
    %v228 = vunpack.c.l.b16 %v74
    %v229 = vunpack.c.h.b16 %v74
    %v230 = vunpack.c.l.b16 %v75
    %v231 = vunpack.c.h.b16 %v75
    %v232 = vpack.c.b16 %v164, %v162
    %v233 = vpack.c.b16 %v165, %v163
    %v234 = vpack.c.b16 %v168, %v166
    %v235 = vpack.c.b16 %v169, %v167
    %v236 = vpack.c.b16 %v172, %v170
    %v237 = vpack.c.b16 %v173, %v171
    %v238 = vpack.c.b16 %v176, %v174
    %v239 = vpack.c.b16 %v177, %v175
    %v240 = vpack.c.b16 %v180, %v178
    %v241 = vpack.c.b16 %v181, %v179
    %v242 = vpack.c.b16 %v184, %v182
    %v243 = vpack.c.b16 %v185, %v183
    %v244 = vpack.c.b16 %v188, %v186
    %v245 = vpack.c.b16 %v189, %v187
    %v246 = vpack.c.b16 %v192, %v190
    %v247 = vpack.c.b16 %v193, %v191
    %v248 = vpack.c.b16 %v196, %v194
    %v249 = vpack.c.b16 %v197, %v195
    %v250 = vpack.c.b16 %v200, %v198
    %v251 = vpack.c.b16 %v201, %v199
    %v252 = vpack.c.b16 %v204, %v202
    %v253 = vpack.c.b16 %v205, %v203
    %v254 = vpack.c.b16 %v208, %v206
    %v255 = vpack.c.b16 %v209, %v207
    %v256 = vpack.c.b16 %v212, %v210
    %v257 = vpack.c.b16 %v213, %v211
    %v258 = vpack.c.b16 %v216, %v214
    %v259 = vpack.c.b16 %v217, %v215
    %v260 = vpack.c.b16 %v220, %v218
    %v261 = vpack.c.b16 %v221, %v219
    %v262 = vpack.c.b16 %v224, %v222
    %v263 = vpack.c.b16 %v225, %v223
    %v264 = vpack.c.b16 %v228, %v226
    %v265 = vpack.c.b16 %v229, %v227
    %v266 = vpack.c.b16 %v230, %v230
    %v267 = vpack.c.b16 %v231, %v231
    %vm302 = vcmask 195584
    %v304 = vsel %vm302, %v124, 0
    %vm306 = vcmask 1043456
    %v308 = vsel %vm306, %v266, 0
    %v311 = vsel %vm306, %v267, 0
    %313 = vmatprep.subr.bf16.mxu0 %v233
    %314 = vmatpush1.bf16.msra.mxu0 %v232
    %315 = vmatprep.subr.bf16.mxu0 %v235
    %316 = vmatpush1.bf16.msra.mxu0 %v234
    %317 = vmatprep.subr.bf16.mxu0 %v237
    %318 = vmatpush1.bf16.msra.mxu0 %v236
    %319 = vmatprep.subr.bf16.mxu0 %v239
    %320 = vmatpush1.bf16.msra.mxu0 %v238
    %321 = vmatprep.subr.bf16.mxu0 %v241
    %322 = vmatpush1.bf16.msra.mxu0 %v240
    %323 = vmatprep.subr.bf16.mxu0 %v243
    %324 = vmatpush1.bf16.msra.mxu0 %v242
    %325 = vmatprep.subr.bf16.mxu0 %v245
    %326 = vmatpush1.bf16.msra.mxu0 %v244
    %327 = vmatprep.subr.bf16.mxu0 %v247
    %328 = vmatpush1.bf16.msra.mxu0 %v246
    %329 = vmatprep.subr.bf16.mxu0 %v249
    %330 = vmatpush1.bf16.msra.mxu0 %v248
    %331 = vmatprep.subr.bf16.mxu0 %v251
    %332 = vmatpush1.bf16.msra.mxu0 %v250
    %333 = vmatprep.subr.bf16.mxu0 %v253
    %334 = vmatpush1.bf16.msra.mxu0 %v252
    %335 = vmatprep.subr.bf16.mxu0 %v255
    %336 = vmatpush1.bf16.msra.mxu0 %v254
    %337 = vmatprep.subr.bf16.mxu0 %v257
    %338 = vmatpush1.bf16.msra.mxu0 %v256
    %339 = vmatprep.subr.bf16.mxu0 %v259
    %340 = vmatpush1.bf16.msra.mxu0 %v258
    %341 = vmatprep.subr.bf16.mxu0 %v261
    %342 = vmatpush1.bf16.msra.mxu0 %v260
    %343 = vmatprep.subr.bf16.mxu0 %v263
    %344 = vmatpush1.bf16.msra.mxu0 %v262
    %345 = vmatprep.mubr.bf16.mxu0 %v123
    %346 = vmatmul.mubr.bf16.gmra.mrb[0].mxu0 %v116
    %v347 = vpop.f32.mrb[0].mxu0
    %v348 = vadd.f32 %v81, %v347
    %v349 = vpop.f32.mrb[0].mxu0
    %v350 = vadd.f32 %v85, %v349
    %v351 = vpop.f32.mrb[0].mxu0
    %v352 = vpop.f32.mrb[0].mxu0
    %353 = vdwg.mxu0
    %354 = vmatprep.subr.bf16.mxu0 %v265
    %355 = vmatpush1.bf16.msra.mxu0 %v264
    %356 = vmatprep.subr.bf16.mxu0 %v311
    %357 = vmatpush1.bf16.msra.mxu0 %v308
    %358 = vmatprep.subr.bf16.mxu0 0
    %359 = vmatpush1.bf16.msra.mxu0 0
    %360 = vmatprep.subr.bf16.mxu0 0
    %361 = vmatpush1.bf16.msra.mxu0 0
    %362 = vmatprep.subr.bf16.mxu0 0
    %363 = vmatpush1.bf16.msra.mxu0 0
    %364 = vmatprep.subr.bf16.mxu0 0
    %365 = vmatpush1.bf16.msra.mxu0 0
    %366 = vmatprep.subr.bf16.mxu0 0
    %367 = vmatpush1.bf16.msra.mxu0 0
    %368 = vmatprep.subr.bf16.mxu0 0
    %369 = vmatpush1.bf16.msra.mxu0 0
    %370 = vmatprep.subr.bf16.mxu0 0
    %371 = vmatpush1.bf16.msra.mxu0 0
    %372 = vmatprep.subr.bf16.mxu0 0
    %373 = vmatpush1.bf16.msra.mxu0 0
    %374 = vmatprep.subr.bf16.mxu0 0
    %375 = vmatpush1.bf16.msra.mxu0 0
    %376 = vmatprep.subr.bf16.mxu0 0
    %377 = vmatpush1.bf16.msra.mxu0 0
    %378 = vmatprep.subr.bf16.mxu0 0
    %379 = vmatpush1.bf16.msra.mxu0 0
    %380 = vmatprep.subr.bf16.mxu0 0
    %381 = vmatpush1.bf16.msra.mxu0 0
    %382 = vmatprep.subr.bf16.mxu0 0
    %383 = vmatpush1.bf16.msra.mxu0 0
    %384 = vmatprep.subr.bf16.mxu0 0
    %385 = vmatpush1.bf16.msra.mxu0 0
    %386 = vmatprep.mubr.bf16.mxu0 0
    %387 = vmatmul.mubr.bf16.gmra.mrb[0].mxu0 %v304
    %v388 = vpop.f32.mrb[0].mxu0
    %v389 = vadd.f32 %v348, %v388
    %v390 = vpop.f32.mrb[0].mxu0
    %v391 = vadd.f32 %v350, %v390
    %v392 = vpop.f32.mrb[0].mxu0
    %v393 = vpop.f32.mrb[0].mxu0
    %394 = vdwg.mxu0
    %vm395 = vcmp.gt.f32.partialorder %v389, 0.0
    %vm396 = vcmp.gt.f32.partialorder %v391, 0.0
    %v397 = vmin.f32 %v389, 0.0
    %v398 = vmin.f32 %v391, 0.0
    %v399 = vmul.f32 %v397, 1.442695
    %v400 = vpow.pop %v399
    %v401 = vmul.f32 %v398, 1.442695
    %v402 = vpow.pop %v401
    %v403 = vsub.f32 %v400, 1.0
    %v404 = vsub.f32 %v402, 1.0
    %v405 = vsel %vm395, %v389, %v403
    %v406 = vsel %vm396, %v391, %v404
    %v407 = vpack.c.bf16 %v405, %v405
    %v408 = vpack.c.bf16 %v406, %v406
    %v409 = vld [vmem:[%s3] sm:$0xff]
    %v410 = vld [vmem:[%s3 + $0x8] sm:$0xff]
    %v411 = vld [vmem:[%s3 + $0x10] sm:$0xff]
    %v412 = vld [vmem:[%s3 + $0x18] sm:$0xff]
    %v413 = vld [vmem:[%s3 + $0x20] sm:$0xff]
    %v414 = vld [vmem:[%s3 + $0x28] sm:$0xff]
    %v415 = vld [vmem:[%s3 + $0x30] sm:$0xff]
    %v416 = vld [vmem:[%s3 + $0x38] sm:$0xff]
    %v417 = vld [vmem:[%s3 + $0x40] sm:$0xff]
    %v418 = vld [vmem:[%s3 + $0x48] sm:$0xff]
    %v419 = vld [vmem:[%s3 + $0x50] sm:$0xff]
    %v420 = vld [vmem:[%s3 + $0x58] sm:$0xff]
    %v421 = vld [vmem:[%s3 + $0x60] sm:$0xff]
    %v422 = vld [vmem:[%s3 + $0x68] sm:$0xff]
    %v423 = vld [vmem:[%s3 + $0x70] sm:$0xff]
    %v424 = vld [vmem:[%s3 + $0x78] sm:$0xff]
    %v425 = vld [vmem:[%s3 + $0x80] sm:$0xff]
    %v426 = vld [vmem:[%s3 + $0x88] sm:$0xff]
    %v427 = vld [vmem:[%s3 + $0x90] sm:$0xff]
    %v428 = vld [vmem:[%s3 + $0x98] sm:$0xff]
    %v429 = vld [vmem:[%s3 + $0xa0] sm:$0xff]
    %v430 = vld [vmem:[%s3 + $0xa8] sm:$0xff]
    %v431 = vld [vmem:[%s3 + $0xb0] sm:$0xff]
    %v432 = vld [vmem:[%s3 + $0xb8] sm:$0xff]
    %v433 = vld [vmem:[%s3 + $0xc0] sm:$0xff]
    %v434 = vld [vmem:[%s3 + $0xc8] sm:$0xff]
    %v435 = vld [vmem:[%s3 + $0xd0] sm:$0xff]
    %v436 = vld [vmem:[%s3 + $0xd8] sm:$0xff]
    %v437 = vld [vmem:[%s3 + $0xe0] sm:$0xff]
    %v438 = vld [vmem:[%s3 + $0xe8] sm:$0xff]
    %v439 = vld [vmem:[%s3 + $0xf0] sm:$0xff]
    %v440 = vld [vmem:[%s3 + $0xf8] sm:$0xff]
    %v441 = vld [vmem:[%s4] sm:$0x3]
    %v443 = vlaneseq
    %v444 = vshrl.u32 %v443, 7
    %v445 = vsub.s32 0, %v444
    %v446 = vrot.slane %v441, %v445
    %v447 = vlaneseq
    %v448 = vshrl.u32 %v447, 7
    %v449 = vsub.s32 1, %v448
    %v450 = vrot.slane %v441, %v449
    %v485 = vunpack.c.l.b16 %v409
    %v486 = vunpack.c.h.b16 %v409
    %v487 = vunpack.c.l.b16 %v410
    %v488 = vunpack.c.h.b16 %v410
    %v489 = vunpack.c.l.b16 %v411
    %v490 = vunpack.c.h.b16 %v411
    %v491 = vunpack.c.l.b16 %v412
    %v492 = vunpack.c.h.b16 %v412
    %v493 = vunpack.c.l.b16 %v413
    %v494 = vunpack.c.h.b16 %v413
    %v495 = vunpack.c.l.b16 %v414
    %v496 = vunpack.c.h.b16 %v414
    %v497 = vunpack.c.l.b16 %v415
    %v498 = vunpack.c.h.b16 %v415
    %v499 = vunpack.c.l.b16 %v416
    %v500 = vunpack.c.h.b16 %v416
    %v501 = vunpack.c.l.b16 %v417
    %v502 = vunpack.c.h.b16 %v417
    %v503 = vunpack.c.l.b16 %v418
    %v504 = vunpack.c.h.b16 %v418
    %v505 = vunpack.c.l.b16 %v419
    %v506 = vunpack.c.h.b16 %v419
    %v507 = vunpack.c.l.b16 %v420
    %v508 = vunpack.c.h.b16 %v420
    %v509 = vunpack.c.l.b16 %v421
    %v510 = vunpack.c.h.b16 %v421
    %v511 = vunpack.c.l.b16 %v422
    %v512 = vunpack.c.h.b16 %v422
    %v513 = vunpack.c.l.b16 %v423
    %v514 = vunpack.c.h.b16 %v423
    %v515 = vunpack.c.l.b16 %v424
    %v516 = vunpack.c.h.b16 %v424
    %v517 = vunpack.c.l.b16 %v425
    %v518 = vunpack.c.h.b16 %v425
    %v519 = vunpack.c.l.b16 %v426
    %v520 = vunpack.c.h.b16 %v426
    %v521 = vunpack.c.l.b16 %v427
    %v522 = vunpack.c.h.b16 %v427
    %v523 = vunpack.c.l.b16 %v428
    %v524 = vunpack.c.h.b16 %v428
    %v525 = vunpack.c.l.b16 %v429
    %v526 = vunpack.c.h.b16 %v429
    %v527 = vunpack.c.l.b16 %v430
    %v528 = vunpack.c.h.b16 %v430
    %v529 = vunpack.c.l.b16 %v431
    %v530 = vunpack.c.h.b16 %v431
    %v531 = vunpack.c.l.b16 %v432
    %v532 = vunpack.c.h.b16 %v432
    %v533 = vunpack.c.l.b16 %v433
    %v534 = vunpack.c.h.b16 %v433
    %v535 = vunpack.c.l.b16 %v434
    %v536 = vunpack.c.h.b16 %v434
    %v537 = vunpack.c.l.b16 %v435
    %v538 = vunpack.c.h.b16 %v435
    %v539 = vunpack.c.l.b16 %v436
    %v540 = vunpack.c.h.b16 %v436
    %v541 = vunpack.c.l.b16 %v437
    %v542 = vunpack.c.h.b16 %v437
    %v543 = vunpack.c.l.b16 %v438
    %v544 = vunpack.c.h.b16 %v438
    %v545 = vunpack.c.l.b16 %v439
    %v546 = vunpack.c.h.b16 %v439
    %v547 = vunpack.c.l.b16 %v440
    %v548 = vunpack.c.h.b16 %v440
    %v549 = vpack.c.b16 %v487, %v485
    %v550 = vpack.c.b16 %v488, %v486
    %v551 = vpack.c.b16 %v491, %v489
    %v552 = vpack.c.b16 %v492, %v490
    %v553 = vpack.c.b16 %v495, %v493
    %v554 = vpack.c.b16 %v496, %v494
    %v555 = vpack.c.b16 %v499, %v497
    %v556 = vpack.c.b16 %v500, %v498
    %v557 = vpack.c.b16 %v503, %v501
    %v558 = vpack.c.b16 %v504, %v502
    %v559 = vpack.c.b16 %v507, %v505
    %v560 = vpack.c.b16 %v508, %v506
    %v561 = vpack.c.b16 %v511, %v509
    %v562 = vpack.c.b16 %v512, %v510
    %v563 = vpack.c.b16 %v515, %v513
    %v564 = vpack.c.b16 %v516, %v514
    %v565 = vpack.c.b16 %v519, %v517
    %v566 = vpack.c.b16 %v520, %v518
    %v567 = vpack.c.b16 %v523, %v521
    %v568 = vpack.c.b16 %v524, %v522
    %v569 = vpack.c.b16 %v527, %v525
    %v570 = vpack.c.b16 %v528, %v526
    %v571 = vpack.c.b16 %v531, %v529
    %v572 = vpack.c.b16 %v532, %v530
    %v573 = vpack.c.b16 %v535, %v533
    %v574 = vpack.c.b16 %v536, %v534
    %v575 = vpack.c.b16 %v539, %v537
    %v576 = vpack.c.b16 %v540, %v538
    %v577 = vpack.c.b16 %v543, %v541
    %v578 = vpack.c.b16 %v544, %v542
    %v579 = vpack.c.b16 %v547, %v545
    %v580 = vpack.c.b16 %v548, %v546
    %613 = vmatprep.subr.bf16.mxu0 %v550
    %614 = vmatpush1.bf16.msra.mxu0 %v549
    %615 = vmatprep.subr.bf16.mxu0 %v552
    %616 = vmatpush1.bf16.msra.mxu0 %v551
    %617 = vmatprep.subr.bf16.mxu0 %v554
    %618 = vmatpush1.bf16.msra.mxu0 %v553
    %619 = vmatprep.subr.bf16.mxu0 %v556
    %620 = vmatpush1.bf16.msra.mxu0 %v555
    %621 = vmatprep.subr.bf16.mxu0 %v558
    %622 = vmatpush1.bf16.msra.mxu0 %v557
    %623 = vmatprep.subr.bf16.mxu0 %v560
    %624 = vmatpush1.bf16.msra.mxu0 %v559
    %625 = vmatprep.subr.bf16.mxu0 %v562
    %626 = vmatpush1.bf16.msra.mxu0 %v561
    %627 = vmatprep.subr.bf16.mxu0 %v564
    %628 = vmatpush1.bf16.msra.mxu0 %v563
    %629 = vmatprep.subr.bf16.mxu0 %v566
    %630 = vmatpush1.bf16.msra.mxu0 %v565
    %631 = vmatprep.subr.bf16.mxu0 %v568
    %632 = vmatpush1.bf16.msra.mxu0 %v567
    %633 = vmatprep.subr.bf16.mxu0 %v570
    %634 = vmatpush1.bf16.msra.mxu0 %v569
    %635 = vmatprep.subr.bf16.mxu0 %v572
    %636 = vmatpush1.bf16.msra.mxu0 %v571
    %637 = vmatprep.subr.bf16.mxu0 %v574
    %638 = vmatpush1.bf16.msra.mxu0 %v573
    %639 = vmatprep.subr.bf16.mxu0 %v576
    %640 = vmatpush1.bf16.msra.mxu0 %v575
    %641 = vmatprep.subr.bf16.mxu0 %v578
    %642 = vmatpush1.bf16.msra.mxu0 %v577
    %643 = vmatprep.subr.bf16.mxu0 %v580
    %644 = vmatpush1.bf16.msra.mxu0 %v579
    %645 = vmatprep.mubr.bf16.mxu0 %v408
    %646 = vmatmul.mubr.bf16.gmra.mrb[0].mxu0 %v407
    %v647 = vpop.f32.mrb[0].mxu0
    %v648 = vadd.f32 %v446, %v647
    %v649 = vpop.f32.mrb[0].mxu0
    %v650 = vadd.f32 %v450, %v649
    %v651 = vpop.f32.mrb[0].mxu0
    %v652 = vpop.f32.mrb[0].mxu0
    %653 = vdwg.mxu0
    %vm654 = vcmp.gt.f32.partialorder %v648, 0.0
    %vm655 = vcmp.gt.f32.partialorder %v650, 0.0
    %v656 = vmin.f32 %v648, 0.0
    %v657 = vmin.f32 %v650, 0.0
    %v658 = vmul.f32 %v656, 1.442695
    %v659 = vpow.pop %v658
    %v660 = vmul.f32 %v657, 1.442695
    %v661 = vpow.pop %v660
    %v662 = vsub.f32 %v659, 1.0
    %v663 = vsub.f32 %v661, 1.0
    %v664 = vsel %vm654, %v648, %v662
    %v665 = vsel %vm655, %v650, %v663
    %v666 = vpack.c.bf16 %v664, %v664
    %v667 = vpack.c.bf16 %v665, %v665
    %v668 = vld [vmem:[%s5] sm:$0xff]
    %v669 = vld [vmem:[%s5 + $0x8] sm:$0xff]
    %v670 = vld [vmem:[%s5 + $0x10] sm:$0xff]
    %v671 = vld [vmem:[%s5 + $0x18] sm:$0xff]
    %v672 = vld [vmem:[%s5 + $0x20] sm:$0xff]
    %v673 = vld [vmem:[%s5 + $0x28] sm:$0xff]
    %v674 = vld [vmem:[%s5 + $0x30] sm:$0xff]
    %v675 = vld [vmem:[%s5 + $0x38] sm:$0xff]
    %v676 = vld [vmem:[%s5 + $0x40] sm:$0xff]
    %v677 = vld [vmem:[%s5 + $0x48] sm:$0xff]
    %v678 = vld [vmem:[%s5 + $0x50] sm:$0xff]
    %v679 = vld [vmem:[%s5 + $0x58] sm:$0xff]
    %v680 = vld [vmem:[%s5 + $0x60] sm:$0xff]
    %v681 = vld [vmem:[%s5 + $0x68] sm:$0xff]
    %v682 = vld [vmem:[%s5 + $0x70] sm:$0xff]
    %v683 = vld [vmem:[%s5 + $0x78] sm:$0xff]
    %v684 = vld [vmem:[%s5 + $0x80] sm:$0xff]
    %v685 = vld [vmem:[%s5 + $0x88] sm:$0xff]
    %v686 = vld [vmem:[%s5 + $0x90] sm:$0xff]
    %v687 = vld [vmem:[%s5 + $0x98] sm:$0xff]
    %v688 = vld [vmem:[%s5 + $0xa0] sm:$0xff]
    %v689 = vld [vmem:[%s5 + $0xa8] sm:$0xff]
    %v690 = vld [vmem:[%s5 + $0xb0] sm:$0xff]
    %v691 = vld [vmem:[%s5 + $0xb8] sm:$0xff]
    %v692 = vld [vmem:[%s5 + $0xc0] sm:$0xff]
    %v693 = vld [vmem:[%s5 + $0xc8] sm:$0xff]
    %v694 = vld [vmem:[%s5 + $0xd0] sm:$0xff]
    %v695 = vld [vmem:[%s5 + $0xd8] sm:$0xff]
    %v696 = vld [vmem:[%s5 + $0xe0] sm:$0xff]
    %v697 = vld [vmem:[%s5 + $0xe8] sm:$0xff]
    %v698 = vld [vmem:[%s5 + $0xf0] sm:$0xff]
    %v699 = vld [vmem:[%s5 + $0xf8] sm:$0xff]
    %v700 = vld [vmem:[%s6] sm:$0x3]
    %v702 = vlaneseq
    %v703 = vshrl.u32 %v702, 7
    %v704 = vsub.s32 0, %v703
    %v705 = vrot.slane %v700, %v704
    %v706 = vlaneseq
    %v707 = vshrl.u32 %v706, 7
    %v708 = vsub.s32 1, %v707
    %v709 = vrot.slane %v700, %v708
    %v744 = vunpack.c.l.b16 %v668
    %v745 = vunpack.c.h.b16 %v668
    %v746 = vunpack.c.l.b16 %v669
    %v747 = vunpack.c.h.b16 %v669
    %v748 = vunpack.c.l.b16 %v670
    %v749 = vunpack.c.h.b16 %v670
    %v750 = vunpack.c.l.b16 %v671
    %v751 = vunpack.c.h.b16 %v671
    %v752 = vunpack.c.l.b16 %v672
    %v753 = vunpack.c.h.b16 %v672
    %v754 = vunpack.c.l.b16 %v673
    %v755 = vunpack.c.h.b16 %v673
    %v756 = vunpack.c.l.b16 %v674
    %v757 = vunpack.c.h.b16 %v674
    %v758 = vunpack.c.l.b16 %v675
    %v759 = vunpack.c.h.b16 %v675
    %v760 = vunpack.c.l.b16 %v676
    %v761 = vunpack.c.h.b16 %v676
    %v762 = vunpack.c.l.b16 %v677
    %v763 = vunpack.c.h.b16 %v677
    %v764 = vunpack.c.l.b16 %v678
    %v765 = vunpack.c.h.b16 %v678
    %v766 = vunpack.c.l.b16 %v679
    %v767 = vunpack.c.h.b16 %v679
    %v768 = vunpack.c.l.b16 %v680
    %v769 = vunpack.c.h.b16 %v680
    %v770 = vunpack.c.l.b16 %v681
    %v771 = vunpack.c.h.b16 %v681
    %v772 = vunpack.c.l.b16 %v682
    %v773 = vunpack.c.h.b16 %v682
    %v774 = vunpack.c.l.b16 %v683
    %v775 = vunpack.c.h.b16 %v683
    %v776 = vunpack.c.l.b16 %v684
    %v777 = vunpack.c.h.b16 %v684
    %v778 = vunpack.c.l.b16 %v685
    %v779 = vunpack.c.h.b16 %v685
    %v780 = vunpack.c.l.b16 %v686
    %v781 = vunpack.c.h.b16 %v686
    %v782 = vunpack.c.l.b16 %v687
    %v783 = vunpack.c.h.b16 %v687
    %v784 = vunpack.c.l.b16 %v688
    %v785 = vunpack.c.h.b16 %v688
    %v786 = vunpack.c.l.b16 %v689
    %v787 = vunpack.c.h.b16 %v689
    %v788 = vunpack.c.l.b16 %v690
    %v789 = vunpack.c.h.b16 %v690
    %v790 = vunpack.c.l.b16 %v691
    %v791 = vunpack.c.h.b16 %v691
    %v792 = vunpack.c.l.b16 %v692
    %v793 = vunpack.c.h.b16 %v692
    %v794 = vunpack.c.l.b16 %v693
    %v795 = vunpack.c.h.b16 %v693
    %v796 = vunpack.c.l.b16 %v694
    %v797 = vunpack.c.h.b16 %v694
    %v798 = vunpack.c.l.b16 %v695
    %v799 = vunpack.c.h.b16 %v695
    %v800 = vunpack.c.l.b16 %v696
    %v801 = vunpack.c.h.b16 %v696
    %v802 = vunpack.c.l.b16 %v697
    %v803 = vunpack.c.h.b16 %v697
    %v804 = vunpack.c.l.b16 %v698
    %v805 = vunpack.c.h.b16 %v698
    %v806 = vunpack.c.l.b16 %v699
    %v807 = vunpack.c.h.b16 %v699
    %v808 = vpack.c.b16 %v746, %v744
    %v809 = vpack.c.b16 %v747, %v745
    %v810 = vpack.c.b16 %v750, %v748
    %v811 = vpack.c.b16 %v751, %v749
    %v812 = vpack.c.b16 %v754, %v752
    %v813 = vpack.c.b16 %v755, %v753
    %v814 = vpack.c.b16 %v758, %v756
    %v815 = vpack.c.b16 %v759, %v757
    %v816 = vpack.c.b16 %v762, %v760
    %v817 = vpack.c.b16 %v763, %v761
    %v818 = vpack.c.b16 %v766, %v764
    %v819 = vpack.c.b16 %v767, %v765
    %v820 = vpack.c.b16 %v770, %v768
    %v821 = vpack.c.b16 %v771, %v769
    %v822 = vpack.c.b16 %v774, %v772
    %v823 = vpack.c.b16 %v775, %v773
    %v824 = vpack.c.b16 %v778, %v776
    %v825 = vpack.c.b16 %v779, %v777
    %v826 = vpack.c.b16 %v782, %v780
    %v827 = vpack.c.b16 %v783, %v781
    %v828 = vpack.c.b16 %v786, %v784
    %v829 = vpack.c.b16 %v787, %v785
    %v830 = vpack.c.b16 %v790, %v788
    %v831 = vpack.c.b16 %v791, %v789
    %v832 = vpack.c.b16 %v794, %v792
    %v833 = vpack.c.b16 %v795, %v793
    %v834 = vpack.c.b16 %v798, %v796
    %v835 = vpack.c.b16 %v799, %v797
    %v836 = vpack.c.b16 %v802, %v800
    %v837 = vpack.c.b16 %v803, %v801
    %v838 = vpack.c.b16 %v806, %v804
    %v839 = vpack.c.b16 %v807, %v805
    %872 = vmatprep.subr.bf16.mxu0 %v809
    %873 = vmatpush1.bf16.msra.mxu0 %v808
    %874 = vmatprep.subr.bf16.mxu0 %v811
    %875 = vmatpush1.bf16.msra.mxu0 %v810
    %876 = vmatprep.subr.bf16.mxu0 %v813
    %877 = vmatpush1.bf16.msra.mxu0 %v812
    %878 = vmatprep.subr.bf16.mxu0 %v815
    %879 = vmatpush1.bf16.msra.mxu0 %v814
    %880 = vmatprep.subr.bf16.mxu0 %v817
    %881 = vmatpush1.bf16.msra.mxu0 %v816
    %882 = vmatprep.subr.bf16.mxu0 %v819
    %883 = vmatpush1.bf16.msra.mxu0 %v818
    %884 = vmatprep.subr.bf16.mxu0 %v821
    %885 = vmatpush1.bf16.msra.mxu0 %v820
    %886 = vmatprep.subr.bf16.mxu0 %v823
    %887 = vmatpush1.bf16.msra.mxu0 %v822
    %888 = vmatprep.subr.bf16.mxu0 %v825
    %889 = vmatpush1.bf16.msra.mxu0 %v824
    %890 = vmatprep.subr.bf16.mxu0 %v827
    %891 = vmatpush1.bf16.msra.mxu0 %v826
    %892 = vmatprep.subr.bf16.mxu0 %v829
    %893 = vmatpush1.bf16.msra.mxu0 %v828
    %894 = vmatprep.subr.bf16.mxu0 %v831
    %895 = vmatpush1.bf16.msra.mxu0 %v830
    %896 = vmatprep.subr.bf16.mxu0 %v833
    %897 = vmatpush1.bf16.msra.mxu0 %v832
    %898 = vmatprep.subr.bf16.mxu0 %v835
    %899 = vmatpush1.bf16.msra.mxu0 %v834
    %900 = vmatprep.subr.bf16.mxu0 %v837
    %901 = vmatpush1.bf16.msra.mxu0 %v836
    %902 = vmatprep.subr.bf16.mxu0 %v839
    %903 = vmatpush1.bf16.msra.mxu0 %v838
    %904 = vmatprep.mubr.bf16.mxu0 %v667
    %905 = vmatmul.mubr.bf16.gmra.mrb[0].mxu0 %v666
    %v906 = vpop.f32.mrb[0].mxu0
    %v907 = vadd.f32 %v705, %v906
    %v908 = vpop.f32.mrb[0].mxu0
    %v909 = vadd.f32 %v709, %v908
    %v910 = vpop.f32.mrb[0].mxu0
    %v911 = vpop.f32.mrb[0].mxu0
    %912 = vdwg.mxu0
    %vm913 = vcmp.gt.f32.partialorder %v907, 0.0
    %vm914 = vcmp.gt.f32.partialorder %v909, 0.0
    %v915 = vmin.f32 %v907, 0.0
    %v916 = vmin.f32 %v909, 0.0
    %v917 = vmul.f32 %v915, 1.442695
    %v918 = vpow.pop %v917
    %v919 = vmul.f32 %v916, 1.442695
    %v920 = vpow.pop %v919
    %v921 = vsub.f32 %v918, 1.0
    %v922 = vsub.f32 %v920, 1.0
    %v923 = vsel %vm913, %v907, %v921
    %v924 = vsel %vm914, %v909, %v922
    %v925 = vpack.c.bf16 %v923, %v923
    %v926 = vpack.c.bf16 %v924, %v924
    %v927 = vld [vmem:[%s7] sm:$0xff]
    %v928 = vld [vmem:[%s7 + $0x8] sm:$0xff]
    %v929 = vld [vmem:[%s7 + $0x10] sm:$0xff]
    %v930 = vld [vmem:[%s7 + $0x18] sm:$0xff]
    %v931 = vld [vmem:[%s7 + $0x20] sm:$0xff]
    %v932 = vld [vmem:[%s7 + $0x28] sm:$0xff]
    %v933 = vld [vmem:[%s7 + $0x30] sm:$0xff]
    %v934 = vld [vmem:[%s7 + $0x38] sm:$0xff]
    %v935 = vld [vmem:[%s7 + $0x40] sm:$0xff]
    %v936 = vld [vmem:[%s7 + $0x48] sm:$0xff]
    %v937 = vld [vmem:[%s7 + $0x50] sm:$0xff]
    %v938 = vld [vmem:[%s7 + $0x58] sm:$0xff]
    %v939 = vld [vmem:[%s7 + $0x60] sm:$0xff]
    %v940 = vld [vmem:[%s7 + $0x68] sm:$0xff]
    %v941 = vld [vmem:[%s7 + $0x70] sm:$0xff]
    %v942 = vld [vmem:[%s7 + $0x78] sm:$0xff]
    %v943 = vld [vmem:[%s7 + $0x80] sm:$0xff]
    %v944 = vld [vmem:[%s7 + $0x88] sm:$0xff]
    %v945 = vld [vmem:[%s7 + $0x90] sm:$0xff]
    %v946 = vld [vmem:[%s7 + $0x98] sm:$0xff]
    %v947 = vld [vmem:[%s7 + $0xa0] sm:$0xff]
    %v948 = vld [vmem:[%s7 + $0xa8] sm:$0xff]
    %v949 = vld [vmem:[%s7 + $0xb0] sm:$0xff]
    %v950 = vld [vmem:[%s7 + $0xb8] sm:$0xff]
    %v951 = vld [vmem:[%s7 + $0xc0] sm:$0xff]
    %v952 = vld [vmem:[%s7 + $0xc8] sm:$0xff]
    %v953 = vld [vmem:[%s7 + $0xd0] sm:$0xff]
    %v954 = vld [vmem:[%s7 + $0xd8] sm:$0xff]
    %v955 = vld [vmem:[%s7 + $0xe0] sm:$0xff]
    %v956 = vld [vmem:[%s7 + $0xe8] sm:$0xff]
    %v957 = vld [vmem:[%s7 + $0xf0] sm:$0xff]
    %v958 = vld [vmem:[%s7 + $0xf8] sm:$0xff]
    %v959 = vld [vmem:[%s8] sm:$0x3]
    %v961 = vlaneseq
    %v962 = vshrl.u32 %v961, 7
    %v963 = vsub.s32 0, %v962
    %v964 = vrot.slane %v959, %v963
    %v965 = vlaneseq
    %v966 = vshrl.u32 %v965, 7
    %v967 = vsub.s32 1, %v966
    %v968 = vrot.slane %v959, %v967
    %v1003 = vunpack.c.l.b16 %v927
    %v1004 = vunpack.c.h.b16 %v927
    %v1005 = vunpack.c.l.b16 %v928
    %v1006 = vunpack.c.h.b16 %v928
    %v1007 = vunpack.c.l.b16 %v929
    %v1008 = vunpack.c.h.b16 %v929
    %v1009 = vunpack.c.l.b16 %v930
    %v1010 = vunpack.c.h.b16 %v930
    %v1011 = vunpack.c.l.b16 %v931
    %v1012 = vunpack.c.h.b16 %v931
    %v1013 = vunpack.c.l.b16 %v932
    %v1014 = vunpack.c.h.b16 %v932
    %v1015 = vunpack.c.l.b16 %v933
    %v1016 = vunpack.c.h.b16 %v933
    %v1017 = vunpack.c.l.b16 %v934
    %v1018 = vunpack.c.h.b16 %v934
    %v1019 = vunpack.c.l.b16 %v935
    %v1020 = vunpack.c.h.b16 %v935
    %v1021 = vunpack.c.l.b16 %v936
    %v1022 = vunpack.c.h.b16 %v936
    %v1023 = vunpack.c.l.b16 %v937
    %v1024 = vunpack.c.h.b16 %v937
    %v1025 = vunpack.c.l.b16 %v938
    %v1026 = vunpack.c.h.b16 %v938
    %v1027 = vunpack.c.l.b16 %v939
    %v1028 = vunpack.c.h.b16 %v939
    %v1029 = vunpack.c.l.b16 %v940
    %v1030 = vunpack.c.h.b16 %v940
    %v1031 = vunpack.c.l.b16 %v941
    %v1032 = vunpack.c.h.b16 %v941
    %v1033 = vunpack.c.l.b16 %v942
    %v1034 = vunpack.c.h.b16 %v942
    %v1035 = vunpack.c.l.b16 %v943
    %v1036 = vunpack.c.h.b16 %v943
    %v1037 = vunpack.c.l.b16 %v944
    %v1038 = vunpack.c.h.b16 %v944
    %v1039 = vunpack.c.l.b16 %v945
    %v1040 = vunpack.c.h.b16 %v945
    %v1041 = vunpack.c.l.b16 %v946
    %v1042 = vunpack.c.h.b16 %v946
    %v1043 = vunpack.c.l.b16 %v947
    %v1044 = vunpack.c.h.b16 %v947
    %v1045 = vunpack.c.l.b16 %v948
    %v1046 = vunpack.c.h.b16 %v948
    %v1047 = vunpack.c.l.b16 %v949
    %v1048 = vunpack.c.h.b16 %v949
    %v1049 = vunpack.c.l.b16 %v950
    %v1050 = vunpack.c.h.b16 %v950
    %v1051 = vunpack.c.l.b16 %v951
    %v1052 = vunpack.c.h.b16 %v951
    %v1053 = vunpack.c.l.b16 %v952
    %v1054 = vunpack.c.h.b16 %v952
    %v1055 = vunpack.c.l.b16 %v953
    %v1056 = vunpack.c.h.b16 %v953
    %v1057 = vunpack.c.l.b16 %v954
    %v1058 = vunpack.c.h.b16 %v954
    %v1059 = vunpack.c.l.b16 %v955
    %v1060 = vunpack.c.h.b16 %v955
    %v1061 = vunpack.c.l.b16 %v956
    %v1062 = vunpack.c.h.b16 %v956
    %v1063 = vunpack.c.l.b16 %v957
    %v1064 = vunpack.c.h.b16 %v957
    %v1065 = vunpack.c.l.b16 %v958
    %v1066 = vunpack.c.h.b16 %v958
    %v1067 = vpack.c.b16 %v1005, %v1003
    %v1068 = vpack.c.b16 %v1006, %v1004
    %v1069 = vpack.c.b16 %v1009, %v1007
    %v1070 = vpack.c.b16 %v1010, %v1008
    %v1071 = vpack.c.b16 %v1013, %v1011
    %v1072 = vpack.c.b16 %v1014, %v1012
    %v1073 = vpack.c.b16 %v1017, %v1015
    %v1074 = vpack.c.b16 %v1018, %v1016
    %v1075 = vpack.c.b16 %v1021, %v1019
    %v1076 = vpack.c.b16 %v1022, %v1020
    %v1077 = vpack.c.b16 %v1025, %v1023
    %v1078 = vpack.c.b16 %v1026, %v1024
    %v1079 = vpack.c.b16 %v1029, %v1027
    %v1080 = vpack.c.b16 %v1030, %v1028
    %v1081 = vpack.c.b16 %v1033, %v1031
    %v1082 = vpack.c.b16 %v1034, %v1032
    %v1083 = vpack.c.b16 %v1037, %v1035
    %v1084 = vpack.c.b16 %v1038, %v1036
    %v1085 = vpack.c.b16 %v1041, %v1039
    %v1086 = vpack.c.b16 %v1042, %v1040
    %v1087 = vpack.c.b16 %v1045, %v1043
    %v1088 = vpack.c.b16 %v1046, %v1044
    %v1089 = vpack.c.b16 %v1049, %v1047
    %v1090 = vpack.c.b16 %v1050, %v1048
    %v1091 = vpack.c.b16 %v1053, %v1051
    %v1092 = vpack.c.b16 %v1054, %v1052
    %v1093 = vpack.c.b16 %v1057, %v1055
    %v1094 = vpack.c.b16 %v1058, %v1056
    %v1095 = vpack.c.b16 %v1061, %v1059
    %v1096 = vpack.c.b16 %v1062, %v1060
    %v1097 = vpack.c.b16 %v1065, %v1063
    %v1098 = vpack.c.b16 %v1066, %v1064
    %1131 = vmatprep.subr.bf16.mxu0 %v1068
    %1132 = vmatpush1.bf16.msra.mxu0 %v1067
    %1133 = vmatprep.subr.bf16.mxu0 %v1070
    %1134 = vmatpush1.bf16.msra.mxu0 %v1069
    %1135 = vmatprep.subr.bf16.mxu0 %v1072
    %1136 = vmatpush1.bf16.msra.mxu0 %v1071
    %1137 = vmatprep.subr.bf16.mxu0 %v1074
    %1138 = vmatpush1.bf16.msra.mxu0 %v1073
    %1139 = vmatprep.subr.bf16.mxu0 %v1076
    %1140 = vmatpush1.bf16.msra.mxu0 %v1075
    %1141 = vmatprep.subr.bf16.mxu0 %v1078
    %1142 = vmatpush1.bf16.msra.mxu0 %v1077
    %1143 = vmatprep.subr.bf16.mxu0 %v1080
    %1144 = vmatpush1.bf16.msra.mxu0 %v1079
    %1145 = vmatprep.subr.bf16.mxu0 %v1082
    %1146 = vmatpush1.bf16.msra.mxu0 %v1081
    %1147 = vmatprep.subr.bf16.mxu0 %v1084
    %1148 = vmatpush1.bf16.msra.mxu0 %v1083
    %1149 = vmatprep.subr.bf16.mxu0 %v1086
    %1150 = vmatpush1.bf16.msra.mxu0 %v1085
    %1151 = vmatprep.subr.bf16.mxu0 %v1088
    %1152 = vmatpush1.bf16.msra.mxu0 %v1087
    %1153 = vmatprep.subr.bf16.mxu0 %v1090
    %1154 = vmatpush1.bf16.msra.mxu0 %v1089
    %1155 = vmatprep.subr.bf16.mxu0 %v1092
    %1156 = vmatpush1.bf16.msra.mxu0 %v1091
    %1157 = vmatprep.subr.bf16.mxu0 %v1094
    %1158 = vmatpush1.bf16.msra.mxu0 %v1093
    %1159 = vmatprep.subr.bf16.mxu0 %v1096
    %1160 = vmatpush1.bf16.msra.mxu0 %v1095
    %1161 = vmatprep.subr.bf16.mxu0 %v1098
    %1162 = vmatpush1.bf16.msra.mxu0 %v1097
    %1163 = vmatprep.mubr.bf16.mxu0 %v926
    %1164 = vmatmul.mubr.bf16.gmra.mrb[0].mxu0 %v925
    %v1165 = vpop.f32.mrb[0].mxu0
    %v1166 = vadd.f32 %v964, %v1165
    %v1167 = vpop.f32.mrb[0].mxu0
    %v1168 = vadd.f32 %v968, %v1167
    %v1169 = vpop.f32.mrb[0].mxu0
    %v1170 = vpop.f32.mrb[0].mxu0
    %1171 = vdwg.mxu0
    %v1172 = vlaneseq
    %v1173 = vand.u32 %v1172, 127
    %v1174 = vadd.s32 %v1173, 128
    %vm1175 = vcmp.lt.s32.totalorder %v1173, 243
    %vm1176 = vcmp.lt.s32.totalorder %v1174, 243
    %v1177 = vsel %vm1175, %v1166, -1e+30
    %v1178 = vsel %vm1176, %v1168, -1e+30
    %v1179 = vmax.f32 %v1177, %v1178
    %1180 = vmax.xlane.f32.xlu0 %v1179
    %v1181 = vpop.xlane.xlu0 %1180
    %v1182 = vsub.f32 %v1177, %v1181
    %v1183 = vsub.f32 %v1178, %v1181
    %v1184 = vmul.f32 %v1182, 1.442695
    %v1185 = vpow.pop %v1184
    %v1186 = vmul.f32 %v1183, 1.442695
    %v1187 = vpow.pop %v1186
    %v1188 = vadd.f32 %v1185, %v1187
    %1189 = vadd.xlane.f32.xlu0 %v1188
    %v1190 = vpop.xlane.xlu0 %1189
    %v1191 = vrcp.pop %v1190
    %v1192 = vmul.f32 1.0, %v1191
    %v1193 = vlog2.pop %v1190
    %v1194 = vmul.f32 %v1193, 0.6931472
    %v1195 = vsub.f32 %v1182, %v1194
    %v1196 = vsub.f32 %v1183, %v1194
    %v1197 = vpack.c.bf16 %v1195, %v1195
    %v1198 = vpack.c.bf16 %v1196, %v1196
    %v1201 = vcombine.low %v1197, %v1198
    %v1203 = vunpack.c.l.s4 1966171168
    %v1204 = vunpack.c.0.s8 %v1203
    %v1205 = vlaneseq
    %v1206 = vshrl.u32 %v1205, 7
    %v1207 = vsub.s32 %v1204, %v1206
    %v1208 = vrot.slane %v1201, %v1207
    %v1209 = vcombine.high %v1208, %v1208
    %v1211 = vunpack.c.l.s4 1966171168
    %v1212 = vunpack.c.0.s8 %v1211
    %v1213 = vlaneseq
    %v1214 = vshrl.u32 %v1213, 7
    %v1215 = vsub.s32 %v1212, %v1214
    %v1216 = vrot.slane %v1208, %v1215
    %v1218 = vunpack.c.l.s4 1966171168
    %v1219 = vunpack.c.0.s8 %v1218
    %v1220 = vlaneseq
    %v1221 = vshrl.u32 %v1220, 7
    %v1222 = vsub.s32 %v1219, %v1221
    %v1223 = vrot.slane %v1209, %v1222
    %v1224 = vcombine.high %v1216, %v1216
    %v1225 = vcombine.high %v1223, %v1223
    %1230 = vst [vmem:[#allocation2] sm:$0x3] %v1216
    %1231 = vst [vmem:[#allocation2 + $0x2] sm:$0x3] %v1223
    %1232 = vst [vmem:[#allocation2 + $0x4] sm:$0x3] %v1224
    %1233 = vst [vmem:[#allocation2 + $0x6] sm:$0x3] %v1225
    %v1234 = vmul.f32 %v1185, %v1192
    %v1235 = vmul.f32 %v1187, %v1192
    %v1236 = vpack.c.bf16 %v1234, %v1234
    %v1237 = vpack.c.bf16 %v1235, %v1235
    %v1240 = vcombine.low %v1236, %v1237
    %v1242 = vunpack.c.l.s4 1966171168
    %v1243 = vunpack.c.0.s8 %v1242
    %v1244 = vlaneseq
    %v1245 = vshrl.u32 %v1244, 7
    %v1246 = vsub.s32 %v1243, %v1245
    %v1247 = vrot.slane %v1240, %v1246
    %v1248 = vcombine.high %v1247, %v1247
    %v1250 = vunpack.c.l.s4 1966171168
    %v1251 = vunpack.c.0.s8 %v1250
    %v1252 = vlaneseq
    %v1253 = vshrl.u32 %v1252, 7
    %v1254 = vsub.s32 %v1251, %v1253
    %v1255 = vrot.slane %v1247, %v1254
    %v1257 = vunpack.c.l.s4 1966171168
    %v1258 = vunpack.c.0.s8 %v1257
    %v1259 = vlaneseq
    %v1260 = vshrl.u32 %v1259, 7
    %v1261 = vsub.s32 %v1258, %v1260
    %v1262 = vrot.slane %v1248, %v1261
    %v1263 = vcombine.high %v1255, %v1255
    %v1264 = vcombine.high %v1262, %v1262
    %1269 = vst [vmem:[#allocation4] sm:$0x3] %v1255
    %1270 = vst [vmem:[#allocation4 + $0x2] sm:$0x3] %v1262
    %1271 = vst [vmem:[#allocation4 + $0x4] sm:$0x3] %v1263
    %1272 = vst [vmem:[#allocation4 + $0x6] sm:$0x3] %v1264
    // Predicated region
    $region38: #{state_action_transition_forward.1} parent=1 // pred_check
      _
    $region39: #{state_action_transition_forward.1} parent=1 // pred_check_branch
      %1274 = sbr.rel (0) target = $region41
    $region40: #{state_action_transition_forward.1} parent=1 // pred_region
      %s1276 = ssub.s32 128, 32
      %1277 = vsyncadd [#allocation3], %s1276
      %s1278 = sshll.u32 [#allocation2], 4
      %s1279 = int_to_ptr.vmem [resolvable:$true] %s1278
      %1284 = dma.vmem_to_hbm [thread:$0]  %s1279, 32, %s9, [#allocation3], 32, 32, 2
    $region41: #{state_action_transition_forward.1} parent=1 // pred_fallthru
      _
    // Predicated region
    $region42: #{state_action_transition_forward.1} parent=1 // pred_check
      _
    $region43: #{state_action_transition_forward.1} parent=1 // pred_check_branch
      %1286 = sbr.rel (0) target = $region45
    $region44: #{state_action_transition_forward.1} parent=1 // pred_region
      %s1288 = ssub.s32 128, 32
      %1289 = vsyncadd [#allocation5], %s1288
      %s1290 = sshll.u32 [#allocation4], 4
      %s1291 = int_to_ptr.vmem [resolvable:$true] %s1290
      %1296 = dma.vmem_to_hbm [thread:$0]  %s1291, 32, %s10, [#allocation5], 32, 32, 2
    $region45: #{state_action_transition_forward.1} parent=1 // pred_fallthru
      _
    // Predicated region
    $region46: #{state_action_transition_forward.1} parent=1 // pred_check
      _
    $region47: #{state_action_transition_forward.1} parent=1 // pred_check_branch
      %1298 = sbr.rel (0) target = $region49
    $region48: #{state_action_transition_forward.1} parent=1 // pred_region
      %1299 = dma.done [#allocation3], 128
    $region49: #{state_action_transition_forward.1} parent=1 // pred_fallthru
      _
    // Predicated region
    $region50: #{state_action_transition_forward.1} parent=1 // pred_check
      _
    $region51: #{state_action_transition_forward.1} parent=1 // pred_check_branch
      %1301 = sbr.rel (0) target = $region53
    $region52: #{state_action_transition_forward.1} parent=1 // pred_region
      %1302 = dma.done [#allocation5], 128
    $region53: #{state_action_transition_forward.1} parent=1 // pred_fallthru
      _
    %1303 = vsyncpa [#allocation3], 1
    %1304 = vsyncpa [#allocation5], 1

</llo_original>
